<compile_context>
chip_gen: v6e
topology: v6e:2x2x1
jax: 0.10.0
libtpu: 0.0.40
codegen_flags: <defaults>
</compile_context>

<pallas_src>
import jax
import jax.numpy as jnp
from jax.experimental import pallas as pl
from jax.experimental.pallas import tpu as pltpu

_LANE = 128
_SUBLANE = 8


def _round_up(x: int, m: int) -> int:
    return (x + m - 1) // m * m


def _largest_divisor(n: int, multiple: int, cap: int):
    """Largest d <= cap with n % d == 0 and d % multiple == 0 (None if none)."""
    best = None
    d = multiple
    cap = min(cap, n)
    while d <= cap:
        if n % d == 0:
            best = d
        d += multiple
    return best


def _vmem_budget_bytes() -> int:
    """Generation-aware VMEM budget: ~3/4 of physical capacity
    (v5e/v6e: 128 MiB -> 96 MiB, v7x: 64 MiB -> 48 MiB)."""
    cap = 64 * 1024 * 1024
    try:
        info = pltpu.get_tpu_info()
        cap = int(getattr(info, "vmem_capacity_bytes", cap)) or cap
    except Exception:
        pass
    return cap * 3 // 4


def _pick_tiles(N, B, S, H, D, x_bytes, pw_bytes, w_bytes, budget_bytes):
    """VMEM-aware (tb, ts): fill ~85% of the budget with the double-buffered
    x stream after accounting for resident weight / bias / out tile / acc."""
    Hl = _round_up(H, _LANE)
    Dl = _round_up(D, _LANE)
    usable = int(budget_bytes * 0.85)

    # Batch tile: prefer a divisor of B (no padded HBM copy of x).
    if B % _SUBLANE == 0:
        tb = _largest_divisor(B, _SUBLANE, 128) or _SUBLANE
    elif B <= 128:
        tb = B                      # single full-dimension tile, no padding
    else:
        tb = 128                    # rare: large, non-8-aligned B -> pad B

    # Guarantee >=2 parallel grid tiles so v7x's two TensorCores both get work.
    if N * ((B + tb - 1) // tb) < 2 and B % _SUBLANE == 0 and tb > _SUBLANE:
        tb = _largest_divisor(B, _SUBLANE, max(_SUBLANE, tb // 2)) or tb

    # Sequence tile from the remaining VMEM budget.
    tbp = _round_up(tb, _SUBLANE)
    fixed = (2 * Hl * Dl * w_bytes          # projection weight, double-buffered
             + 2 * _SUBLANE * Dl * 4        # bias
             + 2 * tbp * Dl * 4             # output tile, double-buffered
             + tbp * Hl * 4)                # f32 accumulator scratch
    per_s = 2 * tbp * (Hl * x_bytes + pw_bytes)   # x + pool_w, double-buffered
    avail = max(usable - fixed, per_s * _SUBLANE)
    ts_max = max(avail // per_s, _SUBLANE)

    if ts_max >= S:
        ts = S                      # whole sequence per grid step (no padding)
    else:
        # Tiled seq reduction: ts must be a multiple of 128 so the [tb, ts]
        # pooling-weight block is lane-aligned (and x's sublane dim aligned).
        ts = _largest_divisor(S, _LANE, int(ts_max))
        if ts is None:
            ts = max(_LANE, (int(ts_max) // _LANE) * _LANE)
    return tb, ts


def _encode_kernel(x_ref, pw_ref, w_ref, b_ref, out_ref, acc_ref):
    """One (feature n, batch-tile i, seq-tile k) grid step.

    x_ref:   [tb, ts, H]  token-embedding tile (streaming dtype, e.g. bf16)
    pw_ref:  [tb, ts]     pooling weights = mask / clamp(sum(mask), 1)
    w_ref:   [H, D]       per-feature projection weight (VMEM-resident)
    b_ref:   [1, D]       per-feature projection bias
    out_ref: [tb, D]      sentence-embedding tile (float32)
    acc_ref: [tb, H]      f32 accumulator, persists across the seq grid axis
    """
    k = pl.program_id(2)

    @pl.when(k == 0)
    def _():
        acc_ref[...] = jnp.zeros_like(acc_ref)

    # Weighted partial sum over this sequence tile, accumulated in f32.
    # The [tb, ts] -> [tb, ts, 1] relayout + lane broadcast is tiny XLU work.
    xf = x_ref[...].astype(jnp.float32)
    pwf = pw_ref[...].astype(jnp.float32)
    acc_ref[...] += jnp.sum(xf * pwf[:, :, None], axis=1)

    @pl.when(k == pl.num_programs(2) - 1)
    def _():
        proj = jnp.dot(acc_ref[...], w_ref[...],
                       preferred_element_type=jnp.float32)     # MXU, [tb, D]
        out_ref[...] = (proj + b_ref[...]).astype(out_ref.dtype)


def encode_batched(x, mask, w, b, *, stream_dtype=jnp.bfloat16, tb=None, ts=None):
    """Fused masked-mean-pool + linear projection for stacked sentence features.

    x:    [N, B, S, H]  token embeddings (all features stacked)
    mask: [N, B, S]     attention masks
    w:    [N, H, D]     per-feature projection weight
    b:    [N, D]        per-feature projection bias
    returns [N, B, D]   sentence embeddings (float32)
    """
    N, B, S, H = x.shape
    D = w.shape[-1]

    # Pooling weights precomputed once (tiny): kernel does only a weighted sum.
    m32 = mask.astype(jnp.float32)
    denom = jnp.maximum(jnp.sum(m32, axis=-1, keepdims=True), 1.0)
    pool_w = (m32 / denom).astype(stream_dtype)                 # [N, B, S]
    xs = x.astype(stream_dtype)                                 # bf16 stream

    budget = _vmem_budget_bytes()
    x_bytes = jnp.dtype(stream_dtype).itemsize
    auto_tb, auto_ts = _pick_tiles(N, B, S, H, D,
                                   x_bytes, x_bytes, w.dtype.itemsize, budget)
    tb = tb or auto_tb
    ts = ts or auto_ts

    Bp = _round_up(B, tb)
    Sp = _round_up(S, ts)
    # Pad only when strictly necessary (jnp.pad materializes a full HBM copy).
    if (Bp, Sp) != (B, S):
        xs = jnp.pad(xs, ((0, 0), (0, Bp - B), (0, Sp - S), (0, 0)))
        pool_w = jnp.pad(pool_w, ((0, 0), (0, Bp - B), (0, Sp - S)))
    b3 = b[:, None, :]                                          # [N, 1, D]

    grid = (N, Bp // tb, Sp // ts)   # seq reduction is the LAST (arbitrary) axis

    out = pl.pallas_call(
        _encode_kernel,
        out_shape=jax.ShapeDtypeStruct((N, Bp, D), jnp.float32),
        grid_spec=pltpu.PrefetchScalarGridSpec(
            num_scalar_prefetch=0,
            grid=grid,
            in_specs=[
                # token embeddings: tiled over batch and seq; H is a full-dim block.
                pl.BlockSpec((None, tb, ts, H), lambda n, i, k: (n, i, k, 0)),
                # pooling weights: [tb, ts] block (no lane-padded singleton).
                pl.BlockSpec((None, tb, ts), lambda n, i, k: (n, i, k)),
                # projection weight/bias: constant across (i, k) -> VMEM-resident.
                pl.BlockSpec((None, H, D), lambda n, i, k: (n, 0, 0)),
                pl.BlockSpec((None, 1, D), lambda n, i, k: (n, 0, 0)),
            ],
            # Same output block across the seq axis -> acts as the revisit target.
            out_specs=pl.BlockSpec((None, tb, D), lambda n, i, k: (n, i, 0)),
            scratch_shapes=[pltpu.VMEM((tb, H), jnp.float32)],
        ),
        compiler_params=pltpu.CompilerParams(
            dimension_semantics=("parallel", "parallel", "arbitrary"),
            vmem_limit_bytes=budget,
        ),
    )(xs, pool_w, w, b3)

    return out[:, :B, :]


class Model:
    """Deterministic synthetic 'model': masked mean pool + linear projection."""

    def __init__(self, hidden: int, embed: int, seed: int):
        kw, kb = jax.random.split(jax.random.PRNGKey(seed))
        self.w = (jax.random.normal(kw, (hidden, embed), jnp.float32)
                  / jnp.sqrt(jnp.float32(hidden)))
        self.b = jax.random.normal(kb, (embed,), jnp.float32) * 0.01


class BaseLoss:
    """JAX mirror of the PyTorch BaseLoss wrapper."""

    def __init__(self, model, dual_model=None):
        self.model = model
        self.dual_model = dual_model

    def encode_all(self, sentence_features, stream_dtype=jnp.bfloat16):
        """Shared hot path of every concrete subclass: encode all features with
        ONE fused Pallas call (features stacked on a leading axis)."""
        feats = list(sentence_features)
        x = jnp.stack([f["token_embeddings"] for f in feats])    # [N, B, S, H]
        mask = jnp.stack([f["attention_mask"] for f in feats])   # [N, B, S]
        models = [self.model if (self.dual_model is None or i == 0)
                  else self.dual_model for i in range(len(feats))]
        w = jnp.stack([m.w for m in models])                     # [N, H, D]
        b = jnp.stack([m.b for m in models])                     # [N, D]
        out = encode_batched(x, mask, w, b, stream_dtype=stream_dtype)
        return [out[i] for i in range(len(feats))]

    def forward(self, sentence_features, labels=None):
        # Faithful to the source: the loss combination itself is abstract.
        raise NotImplementedError


if __name__ == "__main__":
    B, S, H, D = 2, 8, 32, 32
    key = jax.random.PRNGKey(0)
    k1, k2, k3, k4 = jax.random.split(key, 4)

    feat_a = {
        "token_embeddings": jax.random.normal(k1, (B, S, H), jnp.float32),
        "attention_mask": (jax.random.uniform(k2, (B, S)) > 0.2).astype(jnp.float32),
    }
    feat_b = {
        "token_embeddings": jax.random.normal(k3, (B, S, H), jnp.float32),
        "attention_mask": (jax.random.uniform(k4, (B, S)) > 0.2).astype(jnp.float32),
    }

    loss = BaseLoss(Model(H, D, seed=42), dual_model=None)
    embs = loss.encode_all([feat_a, feat_b])
    embs = [jax.block_until_ready(e) for e in embs]

    # Reference mirroring the kernel's bf16 streaming (f32 accumulation).
    def ref(feat, w, b, dtype):
        x = feat["token_embeddings"]
        m = feat["attention_mask"].astype(jnp.float32)
        pw = m / jnp.maximum(m.sum(-1, keepdims=True), 1.0)
        xq = x.astype(dtype).astype(jnp.float32)
        pwq = pw.astype(dtype).astype(jnp.float32)
        pooled = (xq * pwq[:, :, None]).sum(1)
        return pooled @ w + b

    # Full-precision reference (loose check: only input quantization differs).
    def ref_f32(feat, w, b):
        x = feat["token_embeddings"]
        m = feat["attention_mask"].astype(jnp.float32)
        pooled = (x * m[:, :, None]).sum(1) / jnp.maximum(m.sum(1, keepdims=True), 1.0)
        return pooled @ w + b

    for e, feat in zip(embs, [feat_a, feat_b]):
        assert e.shape == (B, D), e.shape
        r = ref(feat, loss.model.w, loss.model.b, jnp.bfloat16)
        assert jnp.allclose(e, r, atol=1e-3, rtol=1e-3), float(jnp.max(jnp.abs(e - r)))
        r32 = ref_f32(feat, loss.model.w, loss.model.b)
        assert jnp.max(jnp.abs(e - r32)) < 5e-2

    print("KERNEL_OK")
</pallas_src>

<mosaic_0001>
module attributes {stable_mosaic.version = 11 : i64} {
  func.func @_encode_kernel(%arg0: i32, %arg1: i32, %arg2: i32, %arg3: memref<1x2x8x32xbf16, #tpu.memory_space<vmem>>, %arg4: memref<1x2x8xbf16, #tpu.memory_space<vmem>>, %arg5: memref<1x32x32xf32, #tpu.memory_space<vmem>>, %arg6: memref<1x1x32xf32, #tpu.memory_space<vmem>>, %arg7: memref<1x2x32xf32, #tpu.memory_space<vmem>>, %arg8: memref<2x32xf32, #tpu.memory_space<vmem>>) attributes {dimension_semantics = [#tpu.dimension_semantics<parallel>, #tpu.dimension_semantics<parallel>, #tpu.dimension_semantics<arbitrary>], iteration_bounds = array<i64: 2, 1, 1>, scalar_prefetch = 0 : i64, scratch_operands = 1 : i64, tpu.core_type = #tpu.core_type<tc>, window_params = [{transform_indices = @transform_0, window_bounds = array<i64: 1, 2, 8, 32>}, {transform_indices = @transform_1, window_bounds = array<i64: 1, 2, 8>}, {transform_indices = @transform_2, window_bounds = array<i64: 1, 32, 32>}, {transform_indices = @transform_3, window_bounds = array<i64: 1, 1, 32>}, {transform_indices = @transform_4, window_bounds = array<i64: 1, 2, 32>}]} {
    %c0_i32 = arith.constant 0 : i32
    %0 = arith.cmpi eq, %arg2, %c0_i32 : i32
    %1 = arith.extui %0 : i1 to i32
    %c0_i32_0 = arith.constant 0 : i32
    %2 = arith.cmpi ne, %1, %c0_i32_0 : i32
    scf.if %2 {
      %cst_13 = arith.constant 0.000000e+00 : f32
      %19 = vector.broadcast %cst_13 : f32 to vector<2x32xf32>
      %c0_14 = arith.constant 0 : index
      %c0_15 = arith.constant 0 : index
      %20 = vector.load %arg8[%c0_14, %c0_15] : memref<2x32xf32, #tpu.memory_space<vmem>>, vector<2x32xf32>
      tpu.vector_store %arg8[%c0_14, %c0_15], %19 {strides = array<i32>} : memref<2x32xf32, #tpu.memory_space<vmem>>, vector<2x32xf32>,
    } else {
    }
    %c0 = arith.constant 0 : index
    %c0_1 = arith.constant 0 : index
    %c0_2 = arith.constant 0 : index
    %c0_3 = arith.constant 0 : index
    %3 = vector.load %arg3[%c0, %c0_1, %c0_2, %c0_3] : memref<1x2x8x32xbf16, #tpu.memory_space<vmem>>, vector<1x2x8x32xbf16>
    %4 = vector.shape_cast %3 : vector<1x2x8x32xbf16> to vector<2x8x32xbf16>
    %5 = arith.extf %4 : vector<2x8x32xbf16> to vector<2x8x32xf32>
    %c0_4 = arith.constant 0 : index
    %c0_5 = arith.constant 0 : index
    %c0_6 = arith.constant 0 : index
    %6 = vector.load %arg4[%c0_4, %c0_5, %c0_6] : memref<1x2x8xbf16, #tpu.memory_space<vmem>>, vector<1x2x8xbf16>
    %7 = vector.shape_cast %6 : vector<1x2x8xbf16> to vector<2x8xbf16>
    %8 = arith.extf %7 : vector<2x8xbf16> to vector<2x8xf32>
    %c0_7 = arith.constant 0 : index
    %c0_8 = arith.constant 0 : index
    %9 = vector.load %arg8[%c0_7, %c0_8] : memref<2x32xf32, #tpu.memory_space<vmem>>, vector<2x32xf32>
    %10 = vector.shape_cast %8 : vector<2x8xf32> to vector<2x8x1xf32>
    %11 = vector.broadcast %10 : vector<2x8x1xf32> to vector<2x8x32xf32>
    %12 = arith.mulf %5, %11 : vector<2x8x32xf32>
    %cst = arith.constant dense<0.000000e+00> : vector<2x32xf32>
    %13 = vector.multi_reduction <add>, %12, %cst [1] : vector<2x8x32xf32> to vector<2x32xf32>
    %14 = arith.addf %9, %13 : vector<2x32xf32>
    %c0_9 = arith.constant 0 : index
    %c0_10 = arith.constant 0 : index
    %15 = vector.load %arg8[%c0_9, %c0_10] : memref<2x32xf32, #tpu.memory_space<vmem>>, vector<2x32xf32>
    tpu.vector_store %arg8[%c0_9, %c0_10], %14 {strides = array<i32>} : memref<2x32xf32, #tpu.memory_space<vmem>>, vector<2x32xf32>,
    %c0_i32_11 = arith.constant 0 : i32
    %16 = arith.cmpi eq, %arg2, %c0_i32_11 : i32
    %17 = arith.extui %16 : i1 to i32
    %c0_i32_12 = arith.constant 0 : i32
    %18 = arith.cmpi ne, %17, %c0_i32_12 : i32
    scf.if %18 {
      %c0_13 = arith.constant 0 : index
      %c0_14 = arith.constant 0 : index
      %19 = vector.load %arg8[%c0_13, %c0_14] : memref<2x32xf32, #tpu.memory_space<vmem>>, vector<2x32xf32>
      %c0_15 = arith.constant 0 : index
      %c0_16 = arith.constant 0 : index
      %c0_17 = arith.constant 0 : index
      %20 = vector.load %arg5[%c0_15, %c0_16, %c0_17] : memref<1x32x32xf32, #tpu.memory_space<vmem>>, vector<1x32x32xf32>
      %21 = vector.shape_cast %20 : vector<1x32x32xf32> to vector<32x32xf32>
      %cst_18 = arith.constant dense<0.000000e+00> : vector<2x32xf32>
      %22 = tpu.matmul %19, %21, %cst_18 {dimension_numbers = #tpu.dot_dimension_numbers<[1], [0], [0], [1], [0, 0, 1, 1], [], []>} : vector<2x32xf32>, vector<32x32xf32>, vector<2x32xf32> -> vector<2x32xf32>
      %c0_19 = arith.constant 0 : index
      %c0_20 = arith.constant 0 : index
      %c0_21 = arith.constant 0 : index
      %23 = vector.load %arg6[%c0_19, %c0_20, %c0_21] : memref<1x1x32xf32, #tpu.memory_space<vmem>>, vector<1x1x32xf32>
      %24 = vector.shape_cast %23 : vector<1x1x32xf32> to vector<1x32xf32>
      %25 = vector.broadcast %24 : vector<1x32xf32> to vector<2x32xf32>
      %26 = arith.addf %22, %25 : vector<2x32xf32>
      %c0_22 = arith.constant 0 : index
      %c0_23 = arith.constant 0 : index
      %c0_24 = arith.constant 0 : index
      %27 = vector.load %arg7[%c0_22, %c0_23, %c0_24] : memref<1x2x32xf32, #tpu.memory_space<vmem>>, vector<1x2x32xf32>
      %28 = vector.shape_cast %27 : vector<1x2x32xf32> to vector<2x32xf32>
      %29 = vector.shape_cast %26 : vector<2x32xf32> to vector<1x2x32xf32>
      tpu.vector_store %arg7[%c0_22, %c0_23, %c0_24], %29 {strides = array<i32>} : memref<1x2x32xf32, #tpu.memory_space<vmem>>, vector<1x2x32xf32>,
    } else {
    }
    return
  }
  func.func @transform_0(%arg0: i32, %arg1: i32, %arg2: i32) -> (i32, i32, i32, i32) {
    %c0_i32 = arith.constant 0 : i32
    %c0_i32_0 = arith.constant 0 : i32
    return %arg0, %arg1, %arg2, %c0_i32 : i32, i32, i32, i32
  }
  func.func @transform_1(%arg0: i32, %arg1: i32, %arg2: i32) -> (i32, i32, i32) {
    %c0_i32 = arith.constant 0 : i32
    return %arg0, %arg1, %arg2 : i32, i32, i32
  }
  func.func @transform_2(%arg0: i32, %arg1: i32, %arg2: i32) -> (i32, i32, i32) {
    %c0_i32 = arith.constant 0 : i32
    %c0_i32_0 = arith.constant 0 : i32
    %c0_i32_1 = arith.constant 0 : i32
    return %arg0, %c0_i32, %c0_i32_0 : i32, i32, i32
  }
  func.func @transform_3(%arg0: i32, %arg1: i32, %arg2: i32) -> (i32, i32, i32) {
    %c0_i32 = arith.constant 0 : i32
    %c0_i32_0 = arith.constant 0 : i32
    %c0_i32_1 = arith.constant 0 : i32
    return %arg0, %c0_i32, %c0_i32_0 : i32, i32, i32
  }
  func.func @transform_4(%arg0: i32, %arg1: i32, %arg2: i32) -> (i32, i32, i32) {
    %c0_i32 = arith.constant 0 : i32
    %c0_i32_0 = arith.constant 0 : i32
    return %arg0, %arg1, %c0_i32 : i32, i32, i32
  }
}

</mosaic_0001>

<llo_original>
// kernel: tpu_custom_call.1
$region0: #{tpu_custom_call.1}
  #allocation0 [shape = 'u32[]', space=smem, size = 0x4, offset = 0x4, fixed_abs, tag = 'smem constant byte address 0x4 - core index']
  #allocation1 [shape = 'u32[144,128]{1,0:T(1,128)}', space=vmem, size = 0x12000, scoped, tag = 'internal scratch']
  #allocation2 [shape = 'f32[2,32]{1,0:T(2,128)}', space=vmem, size = 0x400, scoped, tag = 'scratch operand']
  %s0 = inlined_call_operand.hbm [shape: bf16[2,2,8,32], index: 0, kind: input, shape index: {}]
  %s1 = inlined_call_operand.hbm [shape: bf16[2,2,8], index: 1, kind: input, shape index: {}]
  %s2 = inlined_call_operand.hbm [shape: f32[2,32,32], index: 2, kind: input, shape index: {}]
  %s3 = inlined_call_operand.vmem [shape: f32[2,1,32], index: 3, kind: input, shape index: {}]
  %s4 = inlined_call_operand.hbm [shape: f32[2,2,32], index: 4, kind: output, shape index: {}]
  %s5 = sld [smem:[#allocation0]]
  $region69: #{tpu_custom_call.1} parent=0
    _
  %s7 = ssub.s32 1, %s5
  %s8 = scalar_select 0, %s7, %s5
  $region1: #{tpu_custom_call.1} parent=0
    #allocation3 [shape = 'u8[8192]{0}', space=vmem, size = 0x2000, scoped, tag = 'input window, operand 0']
    #allocation4 [shape = 's32[2]{0}', space=sflag, size = 0x8, scoped, tag = 'scoped memory for tpu_custom_call.1']
    #allocation5 [shape = 's32[2]{0}', space=sflag, size = 0x8, scoped, tag = 'scoped memory for tpu_custom_call.1']
    #allocation6 [shape = 'u8[1024]{0}', space=vmem, size = 0x400, scoped, tag = 'input window, operand 1']
    #allocation7 [shape = 's32[2]{0}', space=sflag, size = 0x8, scoped, tag = 'scoped memory for tpu_custom_call.1']
    #allocation8 [shape = 'u8[32768]{0}', space=vmem, size = 0x8000, scoped, tag = 'input window, operand 2']
    #allocation9 [shape = 'u8[2048]{0}', space=vmem, size = 0x800, scoped, tag = 'output window, operand 0']
    %9 = vsyncpa [#allocation4], 0
    %s10 = scalar_lea.sflag [#allocation4], 1
    %11 = vsyncpa %s10, 0
    %12 = vsyncpa [#allocation7], 0
    %s13 = scalar_lea.sflag [#allocation7], 1
    %14 = vsyncpa %s13, 0
    %15 = vsyncpa [#allocation5], 0
    %s16 = scalar_lea.sflag [#allocation5], 1
    %17 = vsyncpa %s16, 0
    loop: start=0, step=1, limit=4
    $region2: #{tpu_custom_call.1} parent=1 // loop_pre_header
      _
    $region3: #{tpu_custom_call.1} parent=1 // loop_header
      %s19 = sphi 0, %s23
      %p20 = scmp.ge.s32.totalorder %s19, 4
      %s26 = sphi 0, %s45
      %s27 = sphi 0, %s41
      %s28 = sphi 0, %s37
      %s29 = sphi 0, %s26
      %s30 = sphi 0, %s27
      %s31 = sphi 0, %s28
      %s32 = sphi 0, %s29
      %s33 = sphi 0, %s30
      %s34 = sphi 0, %s31
      %s52 = sphi 0, %s54
      %s55 = sphi 0, %s52
      %s56 = sphi 0, %s55
      %s72 = sphi 0, %s56
      %s82 = sphi 0, %s84
      %s85 = sphi 0, %s82
      %s86 = sphi 0, %s85
      %s102 = sphi 0, %s86
      %s108 = sphi 0, %s110
      %s111 = sphi 0, %s108
      %s112 = sphi 0, %s111
      %s128 = sphi 0, %s112
      %s134 = sphi 0, %s136
      %s137 = sphi 0, %s134
      %s138 = sphi 0, %s137
      %s154 = sphi 0, %s138
      %s162 = sphi 0, %s164
      %s165 = sphi 0, %s162
      %s166 = sphi 0, %s165
      %s182 = sphi 0, %s166
    $region4: #{tpu_custom_call.1} parent=1 // loop_header_branch
      %22 = sbr.rel (%p20) target = $region8
    $region5: #{tpu_custom_call.1} parent=1 // loop_body
      %s24 = ssub.s32 %s19, 1
      %s25 = ssub.s32 %s19, 2
      %s35 = sadd.s32 1, %s28
      %p36 = scmp.ge.s32.totalorder %s35, 1
      %s37 = scalar_select %p36, 0, %s35
      %s38 = sadd.s32 1, %s27
      %s39 = scalar_select %p36, %s38, %s27
      %p40 = scmp.ge.s32.totalorder %s39, 1
      %s41 = scalar_select %p40, 0, %s39
      %s42 = sadd.s32 1, %s26
      %s43 = scalar_select %p40, %s42, %s26
      %p44 = scmp.ge.s32.totalorder %s43, 2
      %s45 = scalar_select %p44, 0, %s43
      %s46 = ssub.s32 %s26, %s45
      %s47 = ssub.s32 %s27, %s41
      %s48 = sor.u32 %s46, %s47
      %s49 = ssub.s32 %s28, %s37
      %s50 = sor.u32 %s48, %s49
      %p51 = scmp.eq.s32.totalorder %s50, 0
      %s53 = sadd.s32 %s52, 1
      %s54 = scalar_select %p51, %s52, %s53
      %p57 = pneg %p51
      %p58 = scmp.eq.s32.totalorder %s19, 1
      %p59 = por %p57, %p58
      %p60 = scmp.ne.s32.totalorder %s52, %s55
      %p61 = scmp.eq.s32.totalorder %s19, 0
      %p62 = por %p60, %p61
      %p63 = scmp.ne.s32.totalorder %s52, %s55
      %p64 = scmp.eq.s32.totalorder %s24, 1
      %p65 = por %p63, %p64
      %p66 = scmp.ne.s32.totalorder %s55, %s56
      %p67 = scmp.eq.s32.totalorder %s24, 0
      %p68 = por %p66, %p67
      %p69 = scmp.ne.s32.totalorder %s55, %s56
      %p70 = scmp.eq.s32.totalorder %s25, 1
      %p71 = por %p69, %p70
      %p73 = scmp.ne.s32.totalorder %s56, %s72
      %p74 = scmp.eq.s32.totalorder %s25, 0
      %p75 = por %p73, %p74
      %s76 = ssub.s32 %s26, %s45
      %s77 = ssub.s32 %s27, %s41
      %s78 = sor.u32 %s76, %s77
      %s79 = ssub.s32 %s28, %s37
      %s80 = sor.u32 %s78, %s79
      %p81 = scmp.eq.s32.totalorder %s80, 0
      %s83 = sadd.s32 %s82, 1
      %s84 = scalar_select %p81, %s82, %s83
      %p87 = pneg %p81
      %p88 = scmp.eq.s32.totalorder %s19, 1
      %p89 = por %p87, %p88
      %p90 = scmp.ne.s32.totalorder %s82, %s85
      %p91 = scmp.eq.s32.totalorder %s19, 0
      %p92 = por %p90, %p91
      %p93 = scmp.ne.s32.totalorder %s82, %s85
      %p94 = scmp.eq.s32.totalorder %s24, 1
      %p95 = por %p93, %p94
      %p96 = scmp.ne.s32.totalorder %s85, %s86
      %p97 = scmp.eq.s32.totalorder %s24, 0
      %p98 = por %p96, %p97
      %p99 = scmp.ne.s32.totalorder %s85, %s86
      %p100 = scmp.eq.s32.totalorder %s25, 1
      %p101 = por %p99, %p100
      %p103 = scmp.ne.s32.totalorder %s86, %s102
      %p104 = scmp.eq.s32.totalorder %s25, 0
      %p105 = por %p103, %p104
      %s106 = ssub.s32 %s26, %s45
      %p107 = scmp.eq.s32.totalorder %s106, 0
      %s109 = sadd.s32 %s108, 1
      %s110 = scalar_select %p107, %s108, %s109
      %p113 = pneg %p107
      %p114 = scmp.eq.s32.totalorder %s19, 1
      %p115 = por %p113, %p114
      %p116 = scmp.ne.s32.totalorder %s108, %s111
      %p117 = scmp.eq.s32.totalorder %s19, 0
      %p118 = por %p116, %p117
      %p119 = scmp.ne.s32.totalorder %s108, %s111
      %p120 = scmp.eq.s32.totalorder %s24, 1
      %p121 = por %p119, %p120
      %p122 = scmp.ne.s32.totalorder %s111, %s112
      %p123 = scmp.eq.s32.totalorder %s24, 0
      %p124 = por %p122, %p123
      %p125 = scmp.ne.s32.totalorder %s111, %s112
      %p126 = scmp.eq.s32.totalorder %s25, 1
      %p127 = por %p125, %p126
      %p129 = scmp.ne.s32.totalorder %s112, %s128
      %p130 = scmp.eq.s32.totalorder %s25, 0
      %p131 = por %p129, %p130
      %s132 = ssub.s32 %s26, %s45
      %p133 = scmp.eq.s32.totalorder %s132, 0
      %s135 = sadd.s32 %s134, 1
      %s136 = scalar_select %p133, %s134, %s135
      %p139 = pneg %p133
      %p140 = scmp.eq.s32.totalorder %s19, 1
      %p141 = por %p139, %p140
      %p142 = scmp.ne.s32.totalorder %s134, %s137
      %p143 = scmp.eq.s32.totalorder %s19, 0
      %p144 = por %p142, %p143
      %p145 = scmp.ne.s32.totalorder %s134, %s137
      %p146 = scmp.eq.s32.totalorder %s24, 1
      %p147 = por %p145, %p146
      %p148 = scmp.ne.s32.totalorder %s137, %s138
      %p149 = scmp.eq.s32.totalorder %s24, 0
      %p150 = por %p148, %p149
      %p151 = scmp.ne.s32.totalorder %s137, %s138
      %p152 = scmp.eq.s32.totalorder %s25, 1
      %p153 = por %p151, %p152
      %p155 = scmp.ne.s32.totalorder %s138, %s154
      %p156 = scmp.eq.s32.totalorder %s25, 0
      %p157 = por %p155, %p156
      %s158 = ssub.s32 %s26, %s45
      %s159 = ssub.s32 %s27, %s41
      %s160 = sor.u32 %s158, %s159
      %p161 = scmp.eq.s32.totalorder %s160, 0
      %s163 = sadd.s32 %s162, 1
      %s164 = scalar_select %p161, %s162, %s163
      %p167 = pneg %p161
      %p168 = scmp.eq.s32.totalorder %s19, 1
      %p169 = por %p167, %p168
      %p170 = scmp.ne.s32.totalorder %s162, %s165
      %p171 = scmp.eq.s32.totalorder %s19, 0
      %p172 = por %p170, %p171
      %p173 = scmp.ne.s32.totalorder %s162, %s165
      %p174 = scmp.eq.s32.totalorder %s24, 1
      %p175 = por %p173, %p174
      %p176 = scmp.ne.s32.totalorder %s165, %s166
      %p177 = scmp.eq.s32.totalorder %s24, 0
      %p178 = por %p176, %p177
      %p179 = scmp.ne.s32.totalorder %s165, %s166
      %p180 = scmp.eq.s32.totalorder %s25, 1
      %p181 = por %p179, %p180
      %p183 = scmp.ne.s32.totalorder %s166, %s182
      %p184 = scmp.eq.s32.totalorder %s25, 0
      %p185 = por %p183, %p184
      %p186 = scmp.le.s32.totalorder 1, %s19
      %p187 = scmp.lt.s32.totalorder %s19, 3
      %p188 = pnand %p186, %p187
      %p189 = pneg %p188
      // Predicated region
      $region9: #{tpu_custom_call.1} parent=5 // pred_check
        _
      $region10: #{tpu_custom_call.1} parent=5 // pred_check_branch
        %191 = sbr.rel (%p188) target = $region12
      $region11: #{tpu_custom_call.1} parent=5 // pred_region
        %s192 = ssub.s32 %s19, 1
      $region12: #{tpu_custom_call.1} parent=5 // pred_fallthru
        _
      %p193 = scmp.lt.s32.totalorder %s19, 2
      // Predicated region
      $region13: #{tpu_custom_call.1} parent=5 // pred_check
        %p194 = pneg %p193
      $region14: #{tpu_custom_call.1} parent=5 // pred_check_branch
        %196 = sbr.rel (%p194) target = $region16
      $region15: #{tpu_custom_call.1} parent=5 // pred_region
        // Predicated region
        $region17: #{tpu_custom_call.1} parent=15 // pred_check
          %p197 = pneg %p62
        $region18: #{tpu_custom_call.1} parent=15 // pred_check_branch
          %199 = sbr.rel (%p197) target = $region20
        $region19: #{tpu_custom_call.1} parent=15 // pred_region
          %s200 = sand.u32 %s52, 1
          %s201 = scalar_lea.sflag [#allocation4], %s200
          %s202 = sand.u32 %s52, 1
          %s203 = smul.addr %s202, 8
          %s204 = scalar_lea.vmem [#allocation3], %s203
          %s205 = smul.u32 2, %s27
          %s207 = ssub.s32 128, 128
          %208 = vsyncadd %s201, %s207
          %s209 = sadd.s32 %s28, %s205
          %s210 = smul.addr %s26, 2
          %s211 = sadd.s32 %s209, %s210
          %s212 = smul.addr %s211, 64
          %s213 = scalar_lea.hbm %s0, %s212
          %s214 = sshll.u32 %s204, 4
          %s215 = int_to_ptr.vmem [resolvable:$true] %s214
          %220 = dma.hbm_to_vmem [thread:$0]  %s213, 128, %s215, %s201, 64, 64, 4
        $region20: #{tpu_custom_call.1} parent=15 // pred_fallthru
          _
        // Predicated region
        $region21: #{tpu_custom_call.1} parent=15 // pred_check
          %p221 = pneg %p92
        $region22: #{tpu_custom_call.1} parent=15 // pred_check_branch
          %223 = sbr.rel (%p221) target = $region24
        $region23: #{tpu_custom_call.1} parent=15 // pred_region
          %s224 = sand.u32 %s19, 1
          %s225 = scalar_lea.sflag [#allocation7], %s224
          %s226 = sand.u32 %s82, 1
          %s227 = scalar_lea.vmem [#allocation6], %s226
          %s229 = ssub.s32 16, 16
          %230 = vsyncadd %s225, %s229
          %s231 = sadd.s32 %s28, %s27
          %s232 = sadd.s32 %s231, %s26
          %s233 = smul.addr %s232, 16
          %s234 = scalar_lea.hbm %s1, %s233
          %s236 = sshll.u32 %s227, 4
          %s237 = int_to_ptr.vmem [resolvable:$true] %s236
          %239 = dma.hbm_to_vmem [thread:$0]  %s234, 16, %s237, %s225
        $region24: #{tpu_custom_call.1} parent=15 // pred_fallthru
          _
        // Predicated region
        $region25: #{tpu_custom_call.1} parent=15 // pred_check
          %p240 = pneg %p118
        $region26: #{tpu_custom_call.1} parent=15 // pred_check_branch
          %242 = sbr.rel (%p240) target = $region28
        $region27: #{tpu_custom_call.1} parent=15 // pred_region
          %s243 = sand.u32 %s19, 1
          %s244 = scalar_lea.sflag [#allocation7], %s243
          %s245 = sand.u32 %s108, 1
          %s246 = smul.addr %s245, 32
          %s247 = scalar_lea.vmem [#allocation8], %s246
          %s249 = ssub.s32 512, 512
          %250 = vsyncadd %s244, %s249
          %s251 = smul.addr %s26, 4
          %s252 = smul.addr %s251, 128
          %s253 = scalar_lea.hbm %s2, %s252
          %s254 = sshll.u32 %s247, 4
          %s255 = int_to_ptr.vmem [resolvable:$true] %s254
          %260 = dma.hbm_to_vmem [thread:$0]  %s253, 512, %s255, %s244, 128, 128, 8
        $region28: #{tpu_custom_call.1} parent=15 // pred_fallthru
          _
        // Predicated region
        $region29: #{tpu_custom_call.1} parent=15 // pred_check
          %p261 = pneg %p144
        $region30: #{tpu_custom_call.1} parent=15 // pred_check_branch
          %263 = sbr.rel (%p261) target = $region32
        $region31: #{tpu_custom_call.1} parent=15 // pred_region
          %p264 = scmp.lt.s32.totalorder %s26, 1
          %s265 = scalar_select %p264, %s26, 1
          %s266 = scalar_lea.vmem %s3, %s265
        $region32: #{tpu_custom_call.1} parent=15 // pred_fallthru
          _
      $region16: #{tpu_custom_call.1} parent=5 // pred_fallthru
        _
      %p267 = scmp.le.s32.totalorder 1, %s19
      %p268 = scmp.lt.s32.totalorder %s19, 3
      %p269 = pnand %p267, %p268
      %p270 = pneg %p269
      // Predicated region
      $region33: #{tpu_custom_call.1} parent=5 // pred_check
        _
      $region34: #{tpu_custom_call.1} parent=5 // pred_check_branch
        %272 = sbr.rel (%p269) target = $region36
      $region35: #{tpu_custom_call.1} parent=5 // pred_region
        %s273 = ssub.s32 %s19, 1
        %s274 = sand.u32 %s55, 1
        %s275 = scalar_lea.sflag [#allocation4], %s274
        %s276 = sand.u32 %s55, 1
        %s277 = smul.addr %s276, 8
        %s278 = scalar_lea.vmem [#allocation3], %s277
        // Predicated region
        $region37: #{tpu_custom_call.1} parent=35 // pred_check
          %p279 = pneg %p68
        $region38: #{tpu_custom_call.1} parent=35 // pred_check_branch
          %281 = sbr.rel (%p279) target = $region40
        $region39: #{tpu_custom_call.1} parent=35 // pred_region
          %282 = dma.done %s275, 128
        $region40: #{tpu_custom_call.1} parent=35 // pred_fallthru
          _
        %s283 = sand.u32 %s24, 1
        %s284 = scalar_lea.sflag [#allocation7], %s283
        %s285 = sand.u32 %s85, 1
        %s286 = scalar_lea.vmem [#allocation6], %s285
        // Predicated region
        $region41: #{tpu_custom_call.1} parent=35 // pred_check
          %p287 = pneg %p98
        $region42: #{tpu_custom_call.1} parent=35 // pred_check_branch
          %289 = sbr.rel (%p287) target = $region44
        $region43: #{tpu_custom_call.1} parent=35 // pred_region
          %290 = dma.done %s284, 16
        $region44: #{tpu_custom_call.1} parent=35 // pred_fallthru
          _
        %s291 = sand.u32 %s24, 1
        %s292 = scalar_lea.sflag [#allocation7], %s291
        %s293 = sand.u32 %s111, 1
        %s294 = smul.addr %s293, 32
        %s295 = scalar_lea.vmem [#allocation8], %s294
        // Predicated region
        $region45: #{tpu_custom_call.1} parent=35 // pred_check
          %p296 = pneg %p124
        $region46: #{tpu_custom_call.1} parent=35 // pred_check_branch
          %298 = sbr.rel (%p296) target = $region48
        $region47: #{tpu_custom_call.1} parent=35 // pred_region
          %299 = dma.done %s292, 512
        $region48: #{tpu_custom_call.1} parent=35 // pred_fallthru
          _
        %s300 = sand.u32 %s55, 1
        %s301 = scalar_lea.sflag [#allocation4], %s300
        %s302 = sand.u32 %s55, 1
        %s303 = smul.addr %s302, 8
        %s304 = scalar_lea.vmem [#allocation3], %s303
        %p305 = pneg %p68
        %p306 = pneg %p65
        %s307 = sand.u32 %s24, 1
        %s308 = scalar_lea.sflag [#allocation7], %s307
        %s309 = sand.u32 %s85, 1
        %s310 = scalar_lea.vmem [#allocation6], %s309
        %p311 = pneg %p98
        %p312 = pneg %p95
        %s313 = sand.u32 %s24, 1
        %s314 = scalar_lea.sflag [#allocation7], %s313
        %s315 = sand.u32 %s111, 1
        %s316 = smul.addr %s315, 32
        %s317 = scalar_lea.vmem [#allocation8], %s316
        %p318 = pneg %p124
        %p319 = pneg %p121
        %p320 = scmp.lt.s32.totalorder %s29, 1
        %s321 = scalar_select %p320, %s29, 1
        %s322 = scalar_lea.vmem %s3, %s321
        %p323 = pneg %p150
        %p324 = pneg %p147
        %p325 = pneg %p178
        %p326 = pneg %p175
        %s327 = sand.u32 %s165, 1
        %s328 = scalar_lea.sflag [#allocation5], %s327
        %s329 = sand.u32 %s165, 1
        %s330 = smul.addr %s329, 2
        %s331 = scalar_lea.vmem [#allocation9], %s330
        %s332 = smul.u32 2, %s30
        %p333 = scmp.lt.s32.totalorder %s29, 1
        %s334 = scalar_select %p333, %s29, 1
        %s335 = scalar_lea.vmem %s3, %s334
        %p336 = scmp.eq.s32.totalorder %s31, 0
        // Predicated region
        $region49: #{tpu_custom_call.1} parent=35 // pred_check
          %p337 = pneg %p336
        $region50: #{tpu_custom_call.1} parent=35 // pred_check_branch
          %339 = sbr.rel (%p337) target = $region52
        $region51: #{tpu_custom_call.1} parent=35 // pred_region
          %vm340 = vcmask 254976
          %341 = vst.msk [vmem:[#allocation2] sm:$0x3] %vm340, 0.0
        $region52: #{tpu_custom_call.1} parent=35 // pred_fallthru
          _
        %v342 = vld [vmem:[%s278] sm:$0xf]
        %v343 = vld [vmem:[%s278 + $0x4] sm:$0xf]
        %v344 = vunpack.c.l.bf16 %v342
        %v345 = vunpack.c.l.bf16 %v343
        %v346 = vld [vmem:[%s286] sm:$0x1]
        %v347 = vunpack.c.l.bf16 %v346
        %v348 = vld [vmem:[#allocation2] sm:$0x3]
        %v349 = vlaneseq
        %v350 = vshrl.u32 %v349, 7
        %v351 = vsub.s32 0, %v350
        %v352 = vrot.slane %v347, %v351
        %354 = vbcast.lane.b32.xlu0 %v352, 256
        %v355 = vpop.permute.xlu0 %354
        %v356 = vlaneseq
        %v357 = vshrl.u32 %v356, 7
        %v358 = vsub.s32 1, %v357
        %v359 = vrot.slane %v347, %v358
        %361 = vbcast.lane.b32.xlu0 %v359, 256
        %v362 = vpop.permute.xlu0 %361
        %v363 = vmul.f32 %v344, %v355
        %v364 = vmul.f32 %v345, %v362
        %vm365 = vcmask 261120
        %v366 = vsel %vm365, %v363, 0.0
        %v367 = vrot.slane %v366, 4
        %v368 = vadd.f32 %v366, %v367
        %v369 = vrot.slane %v368, 2
        %v370 = vadd.f32 %v368, %v369
        %v371 = vrot.slane %v370, 1
        %v372 = vadd.f32 %v370, %v371
        %v373 = vsel %vm365, %v364, 0.0
        %v374 = vrot.slane %v373, 4
        %v375 = vadd.f32 %v373, %v374
        %v376 = vrot.slane %v375, 2
        %v377 = vadd.f32 %v375, %v376
        %v378 = vrot.slane %v377, 1
        %v379 = vadd.f32 %v377, %v378
        %vm382 = vcmask 1041409
        %v383 = vsel %vm382, %v379, %v372
        %v385 = vadd.f32 %v348, %v383
        %vm386 = vcmask 254976
        %387 = vst.msk [vmem:[#allocation2] sm:$0x3] %vm386, %v385
        // Predicated region
        $region53: #{tpu_custom_call.1} parent=35 // pred_check
          %p388 = pneg %p336
        $region54: #{tpu_custom_call.1} parent=35 // pred_check_branch
          %390 = sbr.rel (%p388) target = $region56
        $region55: #{tpu_custom_call.1} parent=35 // pred_region
          %v391 = vld [vmem:[#allocation2] sm:$0x3]
          %v392 = vld [vmem:[%s295] sm:$0xff]
          %v393 = vld [vmem:[%s295 + $0x8] sm:$0xff]
          %v394 = vld [vmem:[%s295 + $0x10] sm:$0xff]
          %v395 = vld [vmem:[%s295 + $0x18] sm:$0xff]
          %v396 = vld [vmem:[%s335] sm:$0x1]
          %v398 = vlaneseq
          %v399 = vshrl.u32 %v398, 7
          %v400 = vsub.s32 0, %v399
          %v401 = vrot.slane %v396, %v400
          %v404 = vsel %vm365, %v391, 0
          %406 = vmatprep.subr.mxu0 0.0
          %407 = vmatpush1.msra.mxu0 0.0
          %408 = vmatprep.subr.mxu0 0.0
          %409 = vmatpush1.msra.mxu0 0.0
          %410 = vmatprep.subr.mxu0 0.0
          %411 = vmatpush1.msra.mxu0 0.0
          %412 = vmatprep.subr.mxu0 0.0
          %413 = vmatpush1.msra.mxu0 0.0
          %414 = vmatprep.subr.mxu0 0.0
          %415 = vmatpush1.msra.mxu0 0.0
          %416 = vmatprep.subr.mxu0 0.0
          %417 = vmatpush1.msra.mxu0 0.0
          %418 = vmatprep.subr.mxu0 0.0
          %419 = vmatpush1.msra.mxu0 0.0
          %420 = vmatprep.subr.mxu0 0.0
          %421 = vmatpush1.msra.mxu0 0.0
          %422 = vmatprep.subr.mxu0 0.0
          %423 = vmatpush1.msra.mxu0 0.0
          %424 = vmatprep.subr.mxu0 0.0
          %425 = vmatpush1.msra.mxu0 0.0
          %426 = vmatprep.subr.mxu0 0.0
          %427 = vmatpush1.msra.mxu0 0.0
          %428 = vmatprep.subr.mxu0 0.0
          %429 = vmatpush1.msra.mxu0 0.0
          %430 = vmatprep.subr.mxu0 0.0
          %431 = vmatpush1.msra.mxu0 %v395
          %432 = vmatprep.subr.mxu0 0.0
          %433 = vmatpush1.msra.mxu0 %v394
          %434 = vmatprep.subr.mxu0 0.0
          %435 = vmatpush1.msra.mxu0 %v393
          %436 = vmatprep.subr.mxu0 0.0
          %437 = vmatpush1.msra.mxu0 %v392
          %438 = vmatprep.subr.mxu0 0.0
          %439 = vmatpush2.msra.mxu0 0.0
          %440 = vmatprep.subr.mxu0 0.0
          %441 = vmatpush2.msra.mxu0 0.0
          %442 = vmatprep.subr.mxu0 0.0
          %443 = vmatpush2.msra.mxu0 0.0
          %444 = vmatprep.subr.mxu0 0.0
          %445 = vmatpush2.msra.mxu0 0.0
          %446 = vmatprep.subr.mxu0 0.0
          %447 = vmatpush2.msra.mxu0 0.0
          %448 = vmatprep.subr.mxu0 0.0
          %449 = vmatpush2.msra.mxu0 0.0
          %450 = vmatprep.subr.mxu0 0.0
          %451 = vmatpush2.msra.mxu0 0.0
          %452 = vmatprep.subr.mxu0 0.0
          %453 = vmatpush2.msra.mxu0 0.0
          %454 = vmatprep.subr.mxu0 0.0
          %455 = vmatpush2.msra.mxu0 0.0
          %456 = vmatprep.subr.mxu0 0.0
          %457 = vmatpush2.msra.mxu0 0.0
          %458 = vmatprep.subr.mxu0 0.0
          %459 = vmatpush2.msra.mxu0 0.0
          %460 = vmatprep.subr.mxu0 0.0
          %461 = vmatpush2.msra.mxu0 0.0
          %462 = vmatprep.subr.mxu0 0.0
          %463 = vmatpush2.msra.mxu0 0.0
          %464 = vmatprep.subr.mxu0 0.0
          %465 = vmatpush2.msra.mxu0 0.0
          %466 = vmatprep.subr.mxu0 0.0
          %467 = vmatpush2.msra.mxu0 0.0
          %468 = vmatprep.subr.mxu0 0.0
          %469 = vmatpush2.msra.mxu0 0.0
          %470 = vmatprep.mubr.f32.mxu0 0.0
          %471 = vmatmul.mubr.f32.gmra.mxu0 %v404
          %v472 = vpop.f32.mrf.mxu0
          %v473 = vadd.f32 %v401, %v472
          %v474 = vpop.f32.mrf.mxu0
          %475 = vdwg.mxu0
          %476 = vst.msk [vmem:[%s331] sm:$0x3] %vm386, %v473
        $region56: #{tpu_custom_call.1} parent=35 // pred_fallthru
          _
        %s477 = sand.u32 %s165, 1
        %s478 = scalar_lea.sflag [#allocation5], %s477
        %s479 = sand.u32 %s165, 1
        %s480 = smul.addr %s479, 2
        %s481 = scalar_lea.vmem [#allocation9], %s480
        // Predicated region
        $region57: #{tpu_custom_call.1} parent=35 // pred_check
          %p482 = pneg %p175
        $region58: #{tpu_custom_call.1} parent=35 // pred_check_branch
          %484 = sbr.rel (%p482) target = $region60
        $region59: #{tpu_custom_call.1} parent=35 // pred_region
          %s486 = ssub.s32 32, 32
          %487 = vsyncadd %s478, %s486
          %s488 = sadd.s32 %s30, %s29
          %s489 = smul.addr %s488, 32
          %s490 = scalar_lea.hbm %s4, %s489
          %s492 = sshll.u32 %s481, 4
          %s493 = int_to_ptr.vmem [resolvable:$true] %s492
          %495 = dma.vmem_to_hbm [thread:$0]  %s493, 32, %s490, %s478
        $region60: #{tpu_custom_call.1} parent=35 // pred_fallthru
          _
      $region36: #{tpu_custom_call.1} parent=5 // pred_fallthru
        _
      %p496 = scmp.le.s32.totalorder 2, %s19
      // Predicated region
      $region61: #{tpu_custom_call.1} parent=5 // pred_check
        %p497 = pneg %p496
      $region62: #{tpu_custom_call.1} parent=5 // pred_check_branch
        %499 = sbr.rel (%p497) target = $region64
      $region63: #{tpu_custom_call.1} parent=5 // pred_region
        %s500 = ssub.s32 %s19, 2
        // Predicated region
        $region65: #{tpu_custom_call.1} parent=63 // pred_check
          %p501 = pneg %p181
        $region66: #{tpu_custom_call.1} parent=63 // pred_check_branch
          %503 = sbr.rel (%p501) target = $region68
        $region67: #{tpu_custom_call.1} parent=63 // pred_region
          %s504 = sand.u32 %s166, 1
          %s505 = scalar_lea.sflag [#allocation5], %s504
          %s506 = sand.u32 %s166, 1
          %s507 = smul.addr %s506, 2
          %s508 = scalar_lea.vmem [#allocation9], %s507
          %509 = dma.done %s505, 32
        $region68: #{tpu_custom_call.1} parent=63 // pred_fallthru
          _
      $region64: #{tpu_custom_call.1} parent=5 // pred_fallthru
        _
    $region6: #{tpu_custom_call.1} parent=1 // loop_footer
      %s23 = sadd.s32 1, %s19
    $region7: #{tpu_custom_call.1} parent=1 // loop_footer_branch
      %18 = sbr.rel target = $region3
    $region8: #{tpu_custom_call.1} parent=1 // loop_exit
      _
    %510 = vsyncpa [#allocation4], 1
    %s511 = scalar_lea.sflag [#allocation4], 1
    %512 = vsyncpa %s511, 1
    %513 = vsyncpa [#allocation7], 1
    %s514 = scalar_lea.sflag [#allocation7], 1
    %515 = vsyncpa %s514, 1
    %516 = vsyncpa [#allocation5], 1
    %s517 = scalar_lea.sflag [#allocation5], 1
    %518 = vsyncpa %s517, 1

</llo_original>
